<compile_context>
chip_gen: v7x
topology: tpu7x:2x2x1
jax: 0.10.0
libtpu: 0.0.40
codegen_flags: <defaults>
</compile_context>

<pallas_src>
import functools
import math

import jax
import jax.numpy as jnp
from jax.experimental import pallas as pl
from jax.experimental.pallas import tpu as pltpu

_LANE = 128
_MIB = 1024 * 1024


def _round_up(x: int, m: int) -> int:
    return ((x + m - 1) // m) * m


def _cdiv(a: int, b: int) -> int:
    return -(-a // b)


def _sublane_multiple(dtype) -> int:
    """Minimum second-minor tile multiple for this dtype (f32:8, bf16:16, int8/fp8:32)."""
    return {4: 8, 2: 16, 1: 32}.get(jnp.dtype(dtype).itemsize, 8)


def _vmem_budget_bytes() -> int:
    """Usable scoped-VMEM budget: physical capacity minus 16 MiB headroom for
    compiler-internal scratch / semaphores (robust on v7x's 64 MiB, lets
    v5e/v6e use their 128 MiB)."""
    try:
        cap = int(pltpu.get_tpu_info().vmem_capacity_bytes)
    except Exception:
        cap = 64 * _MIB  # conservative (v7x-sized) fallback
    return max(cap - 16 * _MIB, 24 * _MIB)


# --------------------------------------------------------------------------- #
# Kernels
# --------------------------------------------------------------------------- #
def _lora_plain_kernel(*refs, add_base):
    # Grid (i over row tiles, j over out_dim tiles); both axes independent.
    if add_base:
        x_ref, a_t_ref, b_t_ref, base_ref, o_ref = refs
    else:
        x_ref, a_t_ref, b_t_ref, o_ref = refs
    tmp = jnp.dot(x_ref[...], a_t_ref[...], preferred_element_type=jnp.float32)
    out = jnp.dot(tmp.astype(b_t_ref.dtype), b_t_ref[...],
                  preferred_element_type=jnp.float32)
    if add_base:
        out = out + base_ref[...].astype(jnp.float32)
    o_ref[...] = out.astype(o_ref.dtype)


def _lora_cached_kernel(*refs, add_base):
    # out_dim split across j: compute the first GEMM ONCE per row tile (j == 0)
    # into a VMEM scratch and reuse it for every column tile (j is "arbitrary").
    if add_base:
        x_ref, a_t_ref, b_t_ref, base_ref, o_ref, tmp_ref = refs
    else:
        x_ref, a_t_ref, b_t_ref, o_ref, tmp_ref = refs

    @pl.when(pl.program_id(1) == 0)
    def _():
        tmp_ref[...] = jnp.dot(x_ref[...], a_t_ref[...],
                               preferred_element_type=jnp.float32)

    out = jnp.dot(tmp_ref[...].astype(b_t_ref.dtype), b_t_ref[...],
                  preferred_element_type=jnp.float32)
    if add_base:
        out = out + base_ref[...].astype(jnp.float32)
    o_ref[...] = out.astype(o_ref.dtype)


def _dense_kernel(*refs, add_base):
    # Fused W = B @ A path; K (in_dim) is the reduction axis (last grid dim).
    if add_base:
        x_ref, w_ref, base_ref, o_ref, acc_ref = refs
    else:
        x_ref, w_ref, o_ref, acc_ref = refs
    k = pl.program_id(2)

    @pl.when(k == 0)
    def _():
        acc_ref[...] = jnp.zeros_like(acc_ref)

    acc_ref[...] += jnp.dot(x_ref[...], w_ref[...],
                            preferred_element_type=jnp.float32)

    @pl.when(k == pl.num_programs(2) - 1)
    def _():
        out = acc_ref[...]
        if add_base:
            out = out + base_ref[...].astype(jnp.float32)
        o_ref[...] = out.astype(o_ref.dtype)


# --------------------------------------------------------------------------- #
# Tiling selection (VMEM-footprint driven, lane-padding aware)
# --------------------------------------------------------------------------- #
def _two_pass_footprint(tm, tn, in_dim, rank, itemsize, sub, with_base, cached):
    in_dim_l = _round_up(in_dim, _LANE)
    in_dim_s = _round_up(in_dim, sub)
    rank_l = _round_up(rank, _LANE)   # rank < 128 still occupies 128 lanes
    rank_s = _round_up(rank, sub)
    tn_l = _round_up(tn, _LANE)
    b = 2 * tm * in_dim_l * itemsize          # x row tile (double-buffered)
    b += 2 * in_dim_s * rank_l * itemsize     # A^T (constant index; counted x2)
    b += 2 * rank_s * tn_l * itemsize         # B^T column tile
    b += 2 * tm * tn_l * itemsize             # output tile
    if with_base:
        b += 2 * tm * tn_l * itemsize         # fused residual tile
    if cached:
        b += tm * rank_l * 4                  # f32 scratch for x @ A^T
    # in-kernel f32 intermediates (first-GEMM result, pre-store output)
    b += tm * rank_l * 4 + tm * tn_l * 4
    return b


def _choose_two_pass_tiling(M, in_dim, out_dim, rank, itemsize, sub,
                            with_base, budget, tile_m, tile_n, max_out_tile):
    tm = _round_up(max(1, min(tile_m, M)), sub)
    full_tile_ok = max_out_tile is None or max_out_tile >= out_dim
    while True:
        # Prefer a single full-width out_dim tile: the first GEMM then runs
        # exactly once per row tile and stores are maximally lane-dense.
        if full_tile_ok and _two_pass_footprint(
                tm, out_dim, in_dim, rank, itemsize, sub, with_base,
                cached=False) <= budget:
            return tm, out_dim, False
        # Otherwise split out_dim into 128-multiples (ragged tail handled by
        # Pallas masking) and cache the first GEMM in a VMEM scratch.
        hi = min(_round_up(out_dim, _LANE), _round_up(max(tile_n, _LANE), _LANE))
        if max_out_tile is not None:
            hi = min(hi, max(_LANE, (max_out_tile // _LANE) * _LANE))
        tn = hi
        while tn >= _LANE:
            if _two_pass_footprint(tm, tn, in_dim, rank, itemsize, sub,
                                   with_base, cached=True) <= budget:
                return tm, tn, True
            tn -= _LANE
        # Even a 128-wide column tile does not fit: shrink the row tile.
        if tm > sub:
            tm = max(sub, _round_up(tm // 2, sub))
        else:
            return tm, _LANE, True  # last resort


def _dense_footprint(tm, tn, tk, itemsize, sub, with_base):
    tk_l = _round_up(tk, _LANE)
    tk_s = _round_up(tk, sub)
    tn_l = _round_up(tn, _LANE)
    b = 2 * tm * tk_l * itemsize
    b += 2 * tk_s * tn_l * itemsize
    b += 2 * tm * tn_l * itemsize
    if with_base:
        b += 2 * tm * tn_l * itemsize
    b += 2 * tm * tn_l * 4    # f32 accumulator scratch + pre-store temp
    return b


def _choose_dense_tiling(M, in_dim, out_dim, itemsize, sub, with_base, budget,
                         tile_m, tile_n, tile_k):
    tm = _round_up(max(1, min(tile_m, M)), sub)
    tk = in_dim if in_dim <= tile_k else max(_LANE, (tile_k // _LANE) * _LANE)
    while True:
        if _dense_footprint(tm, out_dim, tk, itemsize, sub, with_base) <= budget:
            return tm, out_dim, tk
        tn = min(_round_up(out_dim, _LANE), _round_up(max(tile_n, _LANE), _LANE))
        while tn >= _LANE:
            if _dense_footprint(tm, tn, tk, itemsize, sub, with_base) <= budget:
                return tm, tn, tk
            tn -= _LANE
        if tm > sub:
            tm = max(sub, _round_up(tm // 2, sub))
        else:
            return tm, _LANE, tk


# --------------------------------------------------------------------------- #
# Wrapper
# --------------------------------------------------------------------------- #
def lora_forward(x, A, B, base=None, *,
                 tile_m=512, tile_n=2048, tile_k=1024, max_out_tile=None):
    """LoRA forward `(x @ A.T) @ B.T` (optionally `+ base`) via Pallas TPU kernels.

    x: (..., in_dim), A: (rank, in_dim), B: (out_dim, rank) -> (..., out_dim)
    base: optional (..., out_dim) frozen-projection output fused into the store.
    max_out_tile: optional cap on the out_dim tile width (tuning / testing knob).
    """
    rank, in_dim = A.shape
    out_dim, rank_b = B.shape
    assert rank_b == rank, "A/B rank mismatch"
    assert x.shape[-1] == in_dim, "x feature dim mismatch"

    if rank == 0:
        # Mirrors the PyTorch reference exactly (torch.zeros_like(x)); note the
        # reference's quirk: shape is (..., in_dim), not (..., out_dim).
        # `base` fusion is not applied on this degenerate branch.
        return jnp.zeros_like(x)

    leading = x.shape[:-1]
    M = int(math.prod(leading)) if leading else 1
    x2d = x.reshape(M, in_dim)

    out_dtype = x.dtype
    itemsize = jnp.dtype(x.dtype).itemsize
    sub = _sublane_multiple(x.dtype)
    budget = _vmem_budget_bytes()
    with_base = base is not None
    base2d = None
    if with_base:
        assert base.shape == (*leading, out_dim), "base shape mismatch"
        base2d = base.reshape(M, out_dim)

    fuse_dense = in_dim * out_dim <= rank * (in_dim + out_dim)

    if fuse_dense:
        # Low-rank path would cost MORE FLOPs than a dense matmul: collapse
        # W = B @ A once (f32 accumulation) and run a single K-tiled GEMM.
        w_t = jnp.dot(A.T, B.T, preferred_element_type=jnp.float32).astype(out_dtype)
        tm, tn, tk = _choose_dense_tiling(M, in_dim, out_dim, itemsize, sub,
                                          with_base, budget, tile_m, tile_n, tile_k)
        grid = (_cdiv(M, tm), _cdiv(out_dim, tn), _cdiv(in_dim, tk))
        in_specs = [
            pl.BlockSpec((tm, tk), lambda i, j, k: (i, k)),
            pl.BlockSpec((tk, tn), lambda i, j, k: (k, j)),
        ]
        args = [x2d, w_t]
        if with_base:
            in_specs.append(pl.BlockSpec((tm, tn), lambda i, j, k: (i, j)))
            args.append(base2d)
        out_specs = pl.BlockSpec((tm, tn), lambda i, j, k: (i, j))
        kernel = functools.partial(_dense_kernel, add_base=with_base)
        scratch = [pltpu.VMEM((tm, tn), jnp.float32)]
        dims = ("parallel", "parallel", "arbitrary")
        flops = 2 * M * in_dim * out_dim
        bytes_accessed = itemsize * (M * (in_dim + out_dim) + in_dim * out_dim
                                     + (M * out_dim if with_base else 0))
    else:
        # Pre-transpose the small factor matrices ONCE so both in-kernel
        # matmuls are plain NN GEMMs feeding the MXU directly.
        a_t = A.T.astype(x.dtype)   # (in_dim, rank)
        b_t = B.T.astype(x.dtype)   # (rank, out_dim)
        tm, tn, cached = _choose_two_pass_tiling(
            M, in_dim, out_dim, rank, itemsize, sub, with_base, budget,
            tile_m, tile_n, max_out_tile)
        gm, gj = _cdiv(M, tm), _cdiv(out_dim, tn)
        if gm == 1:
            # Small-M (decode-style) input: keep >= 2 programs on a "parallel"
            # axis so v7x's second TensorCore gets work.  With M <= tm the
            # recomputed first GEMM per column tile is negligible, so the plain
            # (fully parallel) kernel is used instead of the cached one.
            if gj == 1 and out_dim >= 256:
                tn = min(_round_up(_cdiv(out_dim, 2), _LANE),
                         _round_up(out_dim, _LANE))
                gj = _cdiv(out_dim, tn)
            cached = False
        grid = (gm, gj)
        in_specs = [
            pl.BlockSpec((tm, in_dim), lambda i, j: (i, 0)),     # x row tile
            pl.BlockSpec((in_dim, rank), lambda i, j: (0, 0)),   # A^T (whole)
            pl.BlockSpec((rank, tn), lambda i, j: (0, j)),       # B^T column tile
        ]
        args = [x2d, a_t, b_t]
        if with_base:
            in_specs.append(pl.BlockSpec((tm, tn), lambda i, j: (i, j)))
            args.append(base2d)
        out_specs = pl.BlockSpec((tm, tn), lambda i, j: (i, j))
        if cached:
            kernel = functools.partial(_lora_cached_kernel, add_base=with_base)
            scratch = [pltpu.VMEM((tm, rank), jnp.float32)]
            # j reuses the scratch computed at j == 0 -> must stay "arbitrary".
            dims = ("parallel", "arbitrary")
        else:
            kernel = functools.partial(_lora_plain_kernel, add_base=with_base)
            scratch = []
            dims = ("parallel", "parallel")
        flops = 2 * M * rank * (in_dim + out_dim)
        bytes_accessed = itemsize * (M * (in_dim + out_dim)
                                     + rank * (in_dim + out_dim)
                                     + (M * out_dim if with_base else 0))

    out2d = pl.pallas_call(
        kernel,
        out_shape=jax.ShapeDtypeStruct((M, out_dim), out_dtype),
        grid_spec=pltpu.PrefetchScalarGridSpec(
            num_scalar_prefetch=0,
            grid=grid,
            in_specs=in_specs,
            out_specs=out_specs,
            scratch_shapes=scratch,
        ),
        compiler_params=pltpu.CompilerParams(
            dimension_semantics=dims,
            vmem_limit_bytes=int(budget),
        ),
        cost_estimate=pl.CostEstimate(flops=flops, transcendentals=0,
                                      bytes_accessed=bytes_accessed),
    )(*args)

    return out2d.reshape(*leading, out_dim)


# --------------------------------------------------------------------------- #
if __name__ == "__main__":
    # TODO(synk): the SVD-based weight init branch of __init__ is module
    # construction, not forward; only the random-init parameterization is used.
    key = jax.random.PRNGKey(0)
    keys = jax.random.split(key, 12)

    def ref(x, A, B):
        return (x @ A.T) @ B.T

    # 1) Standard LoRA (rank << dims): single out_dim tile, plain two-pass path.
    in_dim, out_dim, rank = 32, 32, 4
    batch, seq = 2, 8
    x = jax.random.normal(keys[0], (batch, seq, in_dim), dtype=jnp.float32)
    A = jax.random.normal(keys[1], (rank, in_dim), dtype=jnp.float32) / math.sqrt(rank)
    B = jax.random.normal(keys[2], (out_dim, rank), dtype=jnp.float32) / math.sqrt(rank)
    y = jax.block_until_ready(lora_forward(x, A, B))
    assert y.shape == (batch, seq, out_dim)
    assert jnp.allclose(y, ref(x, A, B), atol=1e-4, rtol=1e-4), "plain path mismatch"

    # 2) Forced out_dim split with ragged tail (exercises the cached kernel),
    #    with and without the fused residual add.
    in2, out2, rank2 = 48, 320, 4
    x2 = jax.random.normal(keys[3], (8, 8, in2), dtype=jnp.float32)
    A2 = jax.random.normal(keys[4], (rank2, in2), dtype=jnp.float32) / math.sqrt(rank2)
    B2 = jax.random.normal(keys[5], (out2, rank2), dtype=jnp.float32) / math.sqrt(rank2)
    base2 = jax.random.normal(keys[6], (8, 8, out2), dtype=jnp.float32)
    y2 = jax.block_until_ready(lora_forward(x2, A2, B2, tile_m=8, max_out_tile=128))
    assert y2.shape == (8, 8, out2)
    assert jnp.allclose(y2, ref(x2, A2, B2), atol=1e-4, rtol=1e-4), "cached path mismatch"
    y2b = jax.block_until_ready(
        lora_forward(x2, A2, B2, base2, tile_m=8, max_out_tile=128))
    assert jnp.allclose(y2b, ref(x2, A2, B2) + base2, atol=1e-4, rtol=1e-4), \
        "cached + fused residual mismatch"

    # 3) Small-M / large out_dim (megacore 2-way split) + fused residual add.
    in3, out3, rank3 = 64, 512, 8
    x3 = jax.random.normal(keys[7], (2, 8, in3), dtype=jnp.float32)
    A3 = jax.random.normal(keys[8], (rank3, in3), dtype=jnp.float32) / math.sqrt(rank3)
    B3 = jax.random.normal(keys[9], (out3, rank3), dtype=jnp.float32) / math.sqrt(rank3)
    base3 = jax.random.normal(keys[10], (2, 8, out3), dtype=jnp.float32)
    y3 = jax.block_until_ready(lora_forward(x3, A3, B3))
    assert jnp.allclose(y3, ref(x3, A3, B3), atol=1e-4, rtol=1e-4), "nudge path mismatch"
    y3b = jax.block_until_ready(lora_forward(x3, A3, B3, base3))
    assert jnp.allclose(y3b, ref(x3, A3, B3) + base3, atol=1e-4, rtol=1e-4), \
        "fused residual mismatch"

    # 4) High-rank case (rank > dims): fused dense W = B @ A kernel path.
    in4, out4, rank4 = 16, 16, 32
    x4 = jax.random.normal(keys[0], (2, 8, in4), dtype=jnp.float32)
    A4 = jax.random.normal(keys[1], (rank4, in4), dtype=jnp.float32) / math.sqrt(rank4)
    B4 = jax.random.normal(keys[2], (out4, rank4), dtype=jnp.float32) / math.sqrt(rank4)
    base4 = jax.random.normal(keys[11], (2, 8, out4), dtype=jnp.float32)
    y4 = jax.block_until_ready(lora_forward(x4, A4, B4))
    assert jnp.allclose(y4, ref(x4, A4, B4), atol=1e-4, rtol=1e-4), "dense path mismatch"
    y4b = jax.block_until_ready(lora_forward(x4, A4, B4, base4))
    assert jnp.allclose(y4b, ref(x4, A4, B4) + base4, atol=1e-4, rtol=1e-4), \
        "dense + fused residual mismatch"

    # 5) rank == 0: mirrors torch.zeros_like(x) (reference quirk).
    y0 = lora_forward(x, jnp.zeros((0, in_dim), jnp.float32),
                      jnp.zeros((out_dim, 0), jnp.float32))
    assert y0.shape == x.shape and not jnp.any(y0)

    print("KERNEL_OK")
</pallas_src>

<mosaic_0001>
module attributes {stable_mosaic.version = 11 : i64} {
  func.func @_lora_plain_kernel(%arg0: i32, %arg1: i32, %arg2: memref<16x32xf32, #tpu.memory_space<vmem>>, %arg3: memref<32x4xf32, #tpu.memory_space<vmem>>, %arg4: memref<4x32xf32, #tpu.memory_space<vmem>>, %arg5: memref<16x32xf32, #tpu.memory_space<vmem>>) attributes {dimension_semantics = [#tpu.dimension_semantics<parallel>, #tpu.dimension_semantics<parallel>], iteration_bounds = array<i64: 1, 1>, scalar_prefetch = 0 : i64, scratch_operands = 0 : i64, tpu.core_type = #tpu.core_type<tc>, window_params = [{transform_indices = @transform_0, window_bounds = array<i64: 16, 32>}, {pipeline_mode = #tpu.pipeline_mode<synchronous>, transform_indices = @transform_1, window_bounds = array<i64: 32, 4>}, {transform_indices = @transform_2, window_bounds = array<i64: 4, 32>}, {transform_indices = @transform_3, window_bounds = array<i64: 16, 32>}]} {
    %c0 = arith.constant 0 : index
    %c0_0 = arith.constant 0 : index
    %0 = vector.load %arg2[%c0, %c0_0] : memref<16x32xf32, #tpu.memory_space<vmem>>, vector<16x32xf32>
    %c0_1 = arith.constant 0 : index
    %c0_2 = arith.constant 0 : index
    %1 = vector.load %arg3[%c0_1, %c0_2] : memref<32x4xf32, #tpu.memory_space<vmem>>, vector<32x4xf32>
    %cst = arith.constant dense<0.000000e+00> : vector<16x4xf32>
    %2 = tpu.matmul %0, %1, %cst {dimension_numbers = #tpu.dot_dimension_numbers<[1], [0], [0], [1], [0, 0, 1, 1], [], []>} : vector<16x32xf32>, vector<32x4xf32>, vector<16x4xf32> -> vector<16x4xf32>
    %c0_3 = arith.constant 0 : index
    %c0_4 = arith.constant 0 : index
    %3 = vector.load %arg4[%c0_3, %c0_4] : memref<4x32xf32, #tpu.memory_space<vmem>>, vector<4x32xf32>
    %cst_5 = arith.constant dense<0.000000e+00> : vector<16x32xf32>
    %4 = tpu.matmul %2, %3, %cst_5 {dimension_numbers = #tpu.dot_dimension_numbers<[1], [0], [0], [1], [0, 0, 1, 1], [], []>} : vector<16x4xf32>, vector<4x32xf32>, vector<16x32xf32> -> vector<16x32xf32>
    %c0_6 = arith.constant 0 : index
    %c0_7 = arith.constant 0 : index
    %5 = vector.load %arg5[%c0_6, %c0_7] : memref<16x32xf32, #tpu.memory_space<vmem>>, vector<16x32xf32>
    tpu.vector_store %arg5[%c0_6, %c0_7], %4 {strides = array<i32>} : memref<16x32xf32, #tpu.memory_space<vmem>>, vector<16x32xf32>,
    return
  }
  func.func @transform_0(%arg0: i32, %arg1: i32) -> (i32, i32) {
    %c0_i32 = arith.constant 0 : i32
    %c0_i32_0 = arith.constant 0 : i32
    return %arg0, %c0_i32 : i32, i32
  }
  func.func @transform_1(%arg0: i32, %arg1: i32) -> (i32, i32) {
    %c0_i32 = arith.constant 0 : i32
    %c0_i32_0 = arith.constant 0 : i32
    %c0_i32_1 = arith.constant 0 : i32
    return %c0_i32, %c0_i32_0 : i32, i32
  }
  func.func @transform_2(%arg0: i32, %arg1: i32) -> (i32, i32) {
    %c0_i32 = arith.constant 0 : i32
    %c0_i32_0 = arith.constant 0 : i32
    return %c0_i32, %arg1 : i32, i32
  }
  func.func @transform_3(%arg0: i32, %arg1: i32) -> (i32, i32) {
    %c0_i32 = arith.constant 0 : i32
    return %arg0, %arg1 : i32, i32
  }
}

</mosaic_0001>

<llo_original>
// kernel: tpu_custom_call.1
$region0: #{tpu_custom_call.1}
  #allocation0 [shape = 'u32[]', space=smem, size = 0x4, offset = 0x4, fixed_abs, tag = 'smem constant byte address 0x4 - core index']
  #allocation1 [shape = 'u32[144,128]{1,0:T(1,128)}', space=vmem, size = 0x12000, scoped, tag = 'internal scratch']
  %s0 = inlined_call_operand.vmem [shape: f32[16,32], index: 0, kind: input, shape index: {}]
  %s1 = inlined_call_operand.vmem [shape: f32[32,4], index: 1, kind: input, shape index: {}]
  %s2 = inlined_call_operand.vmem [shape: f32[4,32], index: 2, kind: input, shape index: {}]
  %s3 = inlined_call_operand.hbm [shape: f32[16,32], index: 3, kind: output, shape index: {}]
  %s4 = sld [smem:[#allocation0]]
  $region22: #{tpu_custom_call.1} parent=0
    _
  %s6 = ssub.s32 1, %s4
  %s7 = scalar_select 0, %s6, %s4
  $region1: #{tpu_custom_call.1} parent=0
    #allocation2 [shape = 'u8[8192]{0}', space=vmem, size = 0x2000, scoped, tag = 'output window, operand 0, single buffered']
    #allocation3 [shape = 's32[1]{0}', space=sflag, size = 0x4, scoped, tag = 'scoped memory for tpu_custom_call.1']
    %8 = vsyncpa [#allocation3], 0
    // Predicated region
    $region2: #{tpu_custom_call.1} parent=1 // pred_check
      _
    $region3: #{tpu_custom_call.1} parent=1 // pred_check_branch
      %10 = sbr.rel (0) target = $region5
    $region4: #{tpu_custom_call.1} parent=1 // pred_region
      _
    $region5: #{tpu_custom_call.1} parent=1 // pred_fallthru
      _
    // Predicated region
    $region6: #{tpu_custom_call.1} parent=1 // pred_check
      _
    $region7: #{tpu_custom_call.1} parent=1 // pred_check_branch
      %12 = sbr.rel (0) target = $region9
    $region8: #{tpu_custom_call.1} parent=1 // pred_region
      _
    $region9: #{tpu_custom_call.1} parent=1 // pred_fallthru
      _
    // Predicated region
    $region10: #{tpu_custom_call.1} parent=1 // pred_check
      _
    $region11: #{tpu_custom_call.1} parent=1 // pred_check_branch
      %14 = sbr.rel (0) target = $region13
    $region12: #{tpu_custom_call.1} parent=1 // pred_region
      _
    $region13: #{tpu_custom_call.1} parent=1 // pred_fallthru
      _
    %v15 = vld [vmem:[%s0] sm:$0xff]
    %v16 = vld [vmem:[%s0 + $0x8] sm:$0xff]
    %v17 = vld [vmem:[%s1] sm:$0xff]
    %v18 = vld [vmem:[%s1 + $0x8] sm:$0xff]
    %v19 = vld [vmem:[%s1 + $0x10] sm:$0xff]
    %v20 = vld [vmem:[%s1 + $0x18] sm:$0xff]
    %vm21 = vcmask 261120
    %v23 = vsel %vm21, %v15, 0
    %v26 = vsel %vm21, %v16, 0
    %28 = vmatprep.subr.mxu0 0.0
    %29 = vmatpush1.msra.mxu0 %v17
    %30 = vmatprep.subr.mxu0 0.0
    %31 = vmatpush1.msra.mxu0 %v18
    %32 = vmatprep.subr.mxu0 0.0
    %33 = vmatpush1.msra.mxu0 %v19
    %34 = vmatprep.subr.mxu0 0.0
    %35 = vmatpush1.msra.mxu0 %v20
    %36 = vmatprep.subr.mxu0 0.0
    %37 = vmatpush1.msra.mxu0 0.0
    %38 = vmatprep.subr.mxu0 0.0
    %39 = vmatpush1.msra.mxu0 0.0
    %40 = vmatprep.subr.mxu0 0.0
    %41 = vmatpush1.msra.mxu0 0.0
    %42 = vmatprep.subr.mxu0 0.0
    %43 = vmatpush1.msra.mxu0 0.0
    %44 = vmatprep.subr.mxu0 0.0
    %45 = vmatpush1.msra.mxu0 0.0
    %46 = vmatprep.subr.mxu0 0.0
    %47 = vmatpush1.msra.mxu0 0.0
    %48 = vmatprep.subr.mxu0 0.0
    %49 = vmatpush1.msra.mxu0 0.0
    %50 = vmatprep.subr.mxu0 0.0
    %51 = vmatpush1.msra.mxu0 0.0
    %52 = vmatprep.subr.mxu0 0.0
    %53 = vmatpush1.msra.mxu0 0.0
    %54 = vmatprep.subr.mxu0 0.0
    %55 = vmatpush1.msra.mxu0 0.0
    %56 = vmatprep.subr.mxu0 0.0
    %57 = vmatpush1.msra.mxu0 0.0
    %58 = vmatprep.subr.mxu0 0.0
    %59 = vmatpush1.msra.mxu0 0.0
    %60 = vmatprep.subr.mxu0 0.0
    %61 = vmatpush1.msra.mxu0 0.0
    %62 = vmatprep.subr.mxu0 0.0
    %63 = vmatpush1.msra.mxu0 0.0
    %64 = vmatprep.subr.mxu0 0.0
    %65 = vmatpush1.msra.mxu0 0.0
    %66 = vmatprep.subr.mxu0 0.0
    %67 = vmatpush1.msra.mxu0 0.0
    %68 = vmatprep.subr.mxu0 0.0
    %69 = vmatpush1.msra.mxu0 0.0
    %70 = vmatprep.subr.mxu0 0.0
    %71 = vmatpush1.msra.mxu0 0.0
    %72 = vmatprep.subr.mxu0 0.0
    %73 = vmatpush1.msra.mxu0 0.0
    %74 = vmatprep.subr.mxu0 0.0
    %75 = vmatpush1.msra.mxu0 0.0
    %76 = vmatprep.subr.mxu0 0.0
    %77 = vmatpush1.msra.mxu0 0.0
    %78 = vmatprep.subr.mxu0 0.0
    %79 = vmatpush1.msra.mxu0 0.0
    %80 = vmatprep.subr.mxu0 0.0
    %81 = vmatpush1.msra.mxu0 0.0
    %82 = vmatprep.subr.mxu0 0.0
    %83 = vmatpush1.msra.mxu0 0.0
    %84 = vmatprep.subr.mxu0 0.0
    %85 = vmatpush1.msra.mxu0 0.0
    %86 = vmatprep.subr.mxu0 0.0
    %87 = vmatpush1.msra.mxu0 0.0
    %88 = vmatprep.subr.mxu0 0.0
    %89 = vmatpush1.msra.mxu0 0.0
    %90 = vmatprep.subr.mxu0 0.0
    %91 = vmatpush1.msra.mxu0 0.0
    %92 = vmatprep.mubr.f32.mxu0 0.0
    %93 = vmatmul.mubr.f32.gmra.mrb[0].mxu0 %v23
    %v94 = vpop.f32.mrb[0].mxu0
    %v95 = vadd.f32 0.0, %v94
    %v96 = vpop.f32.mrb[0].mxu0
    %97 = vmatprep.mubr.f32.mxu0 0.0
    %98 = vmatmul.mubr.f32.gmra.mrb[0].mxu0 %v26
    %v99 = vpop.f32.mrb[0].mxu0
    %v100 = vadd.f32 0.0, %v99
    %v101 = vpop.f32.mrb[0].mxu0
    %102 = vdwg.mxu0
    %v103 = vld [vmem:[%s2] sm:$0xf]
    %vm104 = vcmask 31744
    %v106 = vsel %vm104, %v95, 0
    %v109 = vsel %vm104, %v100, 0
    %vm111 = vcmask 1043456
    %v113 = vsel %vm111, %v103, 0
    %115 = vmatprep.subr.mxu0 0.0
    %116 = vmatpush1.msra.mxu0 %v113
    %117 = vmatprep.subr.mxu0 0.0
    %118 = vmatpush1.msra.mxu0 0.0
    %119 = vmatprep.subr.mxu0 0.0
    %120 = vmatpush1.msra.mxu0 0.0
    %121 = vmatprep.subr.mxu0 0.0
    %122 = vmatpush1.msra.mxu0 0.0
    %123 = vmatprep.subr.mxu0 0.0
    %124 = vmatpush1.msra.mxu0 0.0
    %125 = vmatprep.subr.mxu0 0.0
    %126 = vmatpush1.msra.mxu0 0.0
    %127 = vmatprep.subr.mxu0 0.0
    %128 = vmatpush1.msra.mxu0 0.0
    %129 = vmatprep.subr.mxu0 0.0
    %130 = vmatpush1.msra.mxu0 0.0
    %131 = vmatprep.subr.mxu0 0.0
    %132 = vmatpush1.msra.mxu0 0.0
    %133 = vmatprep.subr.mxu0 0.0
    %134 = vmatpush1.msra.mxu0 0.0
    %135 = vmatprep.subr.mxu0 0.0
    %136 = vmatpush1.msra.mxu0 0.0
    %137 = vmatprep.subr.mxu0 0.0
    %138 = vmatpush1.msra.mxu0 0.0
    %139 = vmatprep.subr.mxu0 0.0
    %140 = vmatpush1.msra.mxu0 0.0
    %141 = vmatprep.subr.mxu0 0.0
    %142 = vmatpush1.msra.mxu0 0.0
    %143 = vmatprep.subr.mxu0 0.0
    %144 = vmatpush1.msra.mxu0 0.0
    %145 = vmatprep.subr.mxu0 0.0
    %146 = vmatpush1.msra.mxu0 0.0
    %147 = vmatprep.subr.mxu0 0.0
    %148 = vmatpush1.msra.mxu0 0.0
    %149 = vmatprep.subr.mxu0 0.0
    %150 = vmatpush1.msra.mxu0 0.0
    %151 = vmatprep.subr.mxu0 0.0
    %152 = vmatpush1.msra.mxu0 0.0
    %153 = vmatprep.subr.mxu0 0.0
    %154 = vmatpush1.msra.mxu0 0.0
    %155 = vmatprep.subr.mxu0 0.0
    %156 = vmatpush1.msra.mxu0 0.0
    %157 = vmatprep.subr.mxu0 0.0
    %158 = vmatpush1.msra.mxu0 0.0
    %159 = vmatprep.subr.mxu0 0.0
    %160 = vmatpush1.msra.mxu0 0.0
    %161 = vmatprep.subr.mxu0 0.0
    %162 = vmatpush1.msra.mxu0 0.0
    %163 = vmatprep.subr.mxu0 0.0
    %164 = vmatpush1.msra.mxu0 0.0
    %165 = vmatprep.subr.mxu0 0.0
    %166 = vmatpush1.msra.mxu0 0.0
    %167 = vmatprep.subr.mxu0 0.0
    %168 = vmatpush1.msra.mxu0 0.0
    %169 = vmatprep.subr.mxu0 0.0
    %170 = vmatpush1.msra.mxu0 0.0
    %171 = vmatprep.subr.mxu0 0.0
    %172 = vmatpush1.msra.mxu0 0.0
    %173 = vmatprep.subr.mxu0 0.0
    %174 = vmatpush1.msra.mxu0 0.0
    %175 = vmatprep.subr.mxu0 0.0
    %176 = vmatpush1.msra.mxu0 0.0
    %177 = vmatprep.subr.mxu0 0.0
    %178 = vmatpush1.msra.mxu0 0.0
    %179 = vmatprep.mubr.f32.mxu0 0.0
    %180 = vmatmul.mubr.f32.gmra.mrb[0].mxu0 %v106
    %v181 = vpop.f32.mrb[0].mxu0
    %v182 = vadd.f32 0.0, %v181
    %v183 = vpop.f32.mrb[0].mxu0
    %184 = vmatprep.mubr.f32.mxu0 0.0
    %185 = vmatmul.mubr.f32.gmra.mrb[0].mxu0 %v109
    %v186 = vpop.f32.mrb[0].mxu0
    %v187 = vadd.f32 0.0, %v186
    %v188 = vpop.f32.mrb[0].mxu0
    %189 = vdwg.mxu0
    %190 = vst.msk [vmem:[#allocation2] sm:$0xff] %vm21, %v182
    %191 = vst.msk [vmem:[#allocation2 + $0x8] sm:$0xff] %vm21, %v187
    // Predicated region
    $region14: #{tpu_custom_call.1} parent=1 // pred_check
      _
    $region15: #{tpu_custom_call.1} parent=1 // pred_check_branch
      %193 = sbr.rel (0) target = $region17
    $region16: #{tpu_custom_call.1} parent=1 // pred_region
      %s195 = ssub.s32 256, 256
      %196 = vsyncadd [#allocation3], %s195
      %s197 = sshll.u32 [#allocation2], 4
      %s198 = int_to_ptr.vmem [resolvable:$true] %s197
      %203 = dma.vmem_to_hbm [thread:$0]  %s198, 256, %s3, [#allocation3], 128, 128, 8
    $region17: #{tpu_custom_call.1} parent=1 // pred_fallthru
      _
    // Predicated region
    $region18: #{tpu_custom_call.1} parent=1 // pred_check
      _
    $region19: #{tpu_custom_call.1} parent=1 // pred_check_branch
      %205 = sbr.rel (0) target = $region21
    $region20: #{tpu_custom_call.1} parent=1 // pred_region
      %206 = dma.done [#allocation3], 256
    $region21: #{tpu_custom_call.1} parent=1 // pred_fallthru
      _
    %207 = vsyncpa [#allocation3], 1

</llo_original>
